<compile_context>
chip_gen: v7x
topology: tpu7x:2x2x1
jax: 0.10.0
libtpu: 0.0.40
codegen_flags: <defaults>
</compile_context>

<pallas_src>
import jax
import jax.numpy as jnp
from jax.experimental import pallas as pl
from jax.experimental.pallas import tpu as pltpu

EPS = 1e-6

# Sublane packing per element size (f32 -> 8, bf16/f16 -> 16, int8/fp8 -> 32).
_SUBLANE = {4: 8, 2: 16, 1: 32}

# Aim for this many bytes of the INPUT tensor per grid step.
_TARGET_BLOCK_BYTES = 6 * 1024 * 1024

# Conservative (v7x, 64 MiB physical VMEM) budgets; widened on 128 MiB parts.
_TILE_BUDGET_SMALL_VMEM = 28 * 1024 * 1024
_VMEM_LIMIT_SMALL_VMEM = 56 * 1024 * 1024
_TILE_BUDGET_LARGE_VMEM = 64 * 1024 * 1024
_VMEM_LIMIT_LARGE_VMEM = 100 * 1024 * 1024


def rmsnorm_kernel(x_ref, w_ref, o_ref):
    # x_ref: (block_rows, dim) in x.dtype; w_ref: (1, dim) in x.dtype.
    x = x_ref[...].astype(jnp.float32)                    # x.float()
    ms = jnp.mean(x * x, axis=-1, keepdims=True)          # mean(x^2, -1, keepdim)
    inv = jax.lax.rsqrt(ms + EPS)                         # rsqrt(. + eps)  (EUP)
    # PyTorch ordering: downcast the normalized value to x.dtype, THEN scale
    # by the weight in that dtype (halves post-scale VALU width for bf16).
    xn = (x * inv).astype(o_ref.dtype)
    o_ref[...] = (xn * w_ref[...]).astype(o_ref.dtype)


def _round_up(v, m):
    return -(-v // m) * m


def _vmem_budgets():
    """(tile_budget_bytes, vmem_limit_bytes), generation-aware."""
    cap = None
    try:
        info = pltpu.get_tpu_info()
        cap = getattr(info, "vmem_capacity_bytes", None)
    except Exception:
        cap = None
    if cap is not None and cap >= 96 * 1024 * 1024:
        # v5e / v6e: 128 MiB VMEM — bigger tiles keep the DMA engines saturated.
        return _TILE_BUDGET_LARGE_VMEM, _VMEM_LIMIT_LARGE_VMEM
    # v7x (64 MiB) or unknown: stay conservative.
    return _TILE_BUDGET_SMALL_VMEM, _VMEM_LIMIT_SMALL_VMEM


def _choose_block_rows(rows, dim, dtype, tile_budget):
    itemsize = jnp.dtype(dtype).itemsize
    sub = _SUBLANE.get(itemsize, 8)

    # 1) Byte-targeted block height: ~_TARGET_BLOCK_BYTES of x per step.
    bytes_per_row_x = max(dim * itemsize, 1)
    br = max(sub, (_TARGET_BLOCK_BYTES // bytes_per_row_x) // sub * sub)

    # 2) Cap by the VMEM tile budget: double-buffered in + out tiles plus
    #    ~2 f32 tile-sized temps (x_f32 and x*inv) per row.
    bytes_per_row_total = dim * (4 * itemsize + 8)
    max_rows_vmem = max(sub, (tile_budget // bytes_per_row_total) // sub * sub)
    br = min(br, max_rows_vmem)

    # 3) Keep >= ~4 grid steps when the row count allows it, so that after the
    #    v7x megacore split each TensorCore still owns >= 2 blocks and keeps
    #    its pipeline double-buffered.
    if rows >= 4 * sub:
        quarter = max(sub, _round_up(-(-rows // 4), sub))
        br = min(br, quarter)

    # 4) Never taller than the (sublane-rounded) row count itself.
    br = min(br, max(sub, _round_up(rows, sub)))
    return br


def rmsnorm(x, weight):
    """x: (..., dim); weight: (dim,). Returns same shape/dtype as x."""
    orig_shape = x.shape
    dim = orig_shape[-1]
    rows = 1
    for s in orig_shape[:-1]:
        rows *= s

    if rows == 0:
        # Empty leading dims: nothing to normalize.
        return x

    x2d = x.reshape(rows, dim)
    # Hoist the weight cast to x.dtype out of the grid loop; the kernel then
    # multiplies in the native I/O dtype (matches PyTorch's type_as ordering).
    w2d = weight.astype(x.dtype).reshape(1, dim)

    tile_budget, vmem_limit = _vmem_budgets()
    br = _choose_block_rows(rows, dim, x.dtype, tile_budget)
    grid = (pl.cdiv(rows, br),)   # partial tail tile handled by Pallas masking

    out2d = pl.pallas_call(
        rmsnorm_kernel,
        out_shape=jax.ShapeDtypeStruct((rows, dim), x.dtype),
        grid_spec=pltpu.PrefetchScalarGridSpec(
            num_scalar_prefetch=0,
            grid=grid,
            in_specs=[
                pl.BlockSpec((br, dim), lambda i: (i, 0)),
                pl.BlockSpec((1, dim), lambda i: (0, 0)),   # VMEM-resident weight
            ],
            out_specs=pl.BlockSpec((br, dim), lambda i: (i, 0)),
        ),
        compiler_params=pltpu.CompilerParams(
            dimension_semantics=("parallel",),
            vmem_limit_bytes=vmem_limit,
        ),
    )(x2d, w2d)

    return out2d.reshape(orig_shape)


def rmsnorm_ref(x, weight, eps=EPS):
    xf = x.astype(jnp.float32)
    inv = jax.lax.rsqrt(jnp.mean(xf * xf, axis=-1, keepdims=True) + eps)
    xn = (xf * inv).astype(x.dtype)
    return (xn * weight.astype(x.dtype)).astype(x.dtype)


if __name__ == "__main__":
    key = jax.random.PRNGKey(0)

    # Case 1: shapes implied by the llama module (small).
    batch, seq, dim = 2, 8, 128
    x = jax.random.normal(key, (batch, seq, dim), dtype=jnp.float32)
    weight = jnp.ones((dim,), dtype=jnp.float32)   # nn.Parameter(torch.ones(dim))

    out = rmsnorm(x, weight)
    jax.block_until_ready(out)
    ref = rmsnorm_ref(x, weight)
    assert out.shape == x.shape and out.dtype == x.dtype
    assert jnp.allclose(out, ref, atol=1e-5, rtol=1e-5)

    # Case 2: row count not divisible by the block size (partial tail block),
    # non-trivial weight.
    x2 = jax.random.normal(jax.random.PRNGKey(0), (3, 5, dim), dtype=jnp.float32)
    w2 = jax.random.normal(jax.random.PRNGKey(1), (dim,), dtype=jnp.float32)
    out2 = rmsnorm(x2, w2)
    jax.block_until_ready(out2)
    assert jnp.allclose(out2, rmsnorm_ref(x2, w2), atol=1e-5, rtol=1e-5)

    # Case 3: many rows — exercises the byte-targeted block sizing and the
    # >=4-grid-step path (and bf16 native-dtype post-scale multiply).
    x3 = jax.random.normal(jax.random.PRNGKey(2), (64, 256, dim), dtype=jnp.bfloat16)
    w3 = jnp.asarray(
        jax.random.normal(jax.random.PRNGKey(3), (dim,), dtype=jnp.float32),
        dtype=jnp.bfloat16)
    out3 = rmsnorm(x3, w3)
    jax.block_until_ready(out3)
    ref3 = rmsnorm_ref(x3, w3)
    assert out3.dtype == jnp.bfloat16
    assert jnp.allclose(out3.astype(jnp.float32), ref3.astype(jnp.float32),
                        atol=2e-2, rtol=2e-2)

    print("KERNEL_OK")
</pallas_src>

<mosaic_0001>
module attributes {stable_mosaic.version = 11 : i64} {
  func.func @rmsnorm_kernel(%arg0: i32, %arg1: memref<16x128xf32, #tpu.memory_space<vmem>>, %arg2: memref<1x128xf32, #tpu.memory_space<vmem>>, %arg3: memref<16x128xf32, #tpu.memory_space<vmem>>) attributes {dimension_semantics = [#tpu.dimension_semantics<parallel>], iteration_bounds = array<i64: 1>, scalar_prefetch = 0 : i64, scratch_operands = 0 : i64, tpu.core_type = #tpu.core_type<tc>, window_params = [{transform_indices = @transform_0, window_bounds = array<i64: 16, 128>}, {pipeline_mode = #tpu.pipeline_mode<synchronous>, transform_indices = @transform_1, window_bounds = array<i64: 1, 128>}, {transform_indices = @transform_2, window_bounds = array<i64: 16, 128>}]} {
    %c0 = arith.constant 0 : index
    %c0_0 = arith.constant 0 : index
    %0 = vector.load %arg1[%c0, %c0_0] : memref<16x128xf32, #tpu.memory_space<vmem>>, vector<16x128xf32>
    %1 = arith.mulf %0, %0 : vector<16x128xf32>
    %cst = arith.constant dense<0.000000e+00> : vector<16xf32>
    %2 = vector.multi_reduction <add>, %1, %cst [1] : vector<16x128xf32> to vector<16xf32>
    %3 = vector.shape_cast %2 : vector<16xf32> to vector<16x1xf32>
    %cst_1 = arith.constant 1.280000e+02 : f32
    %4 = vector.broadcast %cst_1 : f32 to vector<16x1xf32>
    %5 = arith.divf %3, %4 : vector<16x1xf32>
    %cst_2 = arith.constant 9.99999997E-7 : f32
    %6 = vector.broadcast %cst_2 : f32 to vector<16x1xf32>
    %7 = arith.addf %5, %6 : vector<16x1xf32>
    %8 = math.rsqrt %7 : vector<16x1xf32>
    %9 = vector.broadcast %8 : vector<16x1xf32> to vector<16x128xf32>
    %10 = arith.mulf %0, %9 : vector<16x128xf32>
    %c0_3 = arith.constant 0 : index
    %c0_4 = arith.constant 0 : index
    %11 = vector.load %arg2[%c0_3, %c0_4] : memref<1x128xf32, #tpu.memory_space<vmem>>, vector<1x128xf32>
    %12 = vector.broadcast %11 : vector<1x128xf32> to vector<16x128xf32>
    %13 = arith.mulf %10, %12 : vector<16x128xf32>
    %c0_5 = arith.constant 0 : index
    %c0_6 = arith.constant 0 : index
    %14 = vector.load %arg3[%c0_5, %c0_6] : memref<16x128xf32, #tpu.memory_space<vmem>>, vector<16x128xf32>
    tpu.vector_store %arg3[%c0_5, %c0_6], %13 {strides = array<i32>} : memref<16x128xf32, #tpu.memory_space<vmem>>, vector<16x128xf32>,
    return
  }
  func.func @transform_0(%arg0: i32) -> (i32, i32) {
    %c0_i32 = arith.constant 0 : i32
    %c0_i32_0 = arith.constant 0 : i32
    return %arg0, %c0_i32 : i32, i32
  }
  func.func @transform_1(%arg0: i32) -> (i32, i32) {
    %c0_i32 = arith.constant 0 : i32
    %c0_i32_0 = arith.constant 0 : i32
    %c0_i32_1 = arith.constant 0 : i32
    return %c0_i32, %c0_i32_0 : i32, i32
  }
  func.func @transform_2(%arg0: i32) -> (i32, i32) {
    %c0_i32 = arith.constant 0 : i32
    %c0_i32_0 = arith.constant 0 : i32
    return %arg0, %c0_i32 : i32, i32
  }
}

</mosaic_0001>

<llo_original>
// kernel: tpu_custom_call.1
$region0: #{tpu_custom_call.1}
  #allocation0 [shape = 'u32[]', space=smem, size = 0x4, offset = 0x4, fixed_abs, tag = 'smem constant byte address 0x4 - core index']
  #allocation1 [shape = 'u32[144,128]{1,0:T(1,128)}', space=vmem, size = 0x12000, scoped, tag = 'internal scratch']
  %s0 = inlined_call_operand.hbm [shape: f32[16,128], index: 0, kind: input, shape index: {}]
  %s1 = inlined_call_operand.vmem [shape: f32[1,128], index: 1, kind: input, shape index: {}]
  %s2 = inlined_call_operand.hbm [shape: f32[16,128], index: 2, kind: output, shape index: {}]
  %s3 = sld [smem:[#allocation0]]
  $region22: #{tpu_custom_call.1} parent=0
    _
  %s5 = ssub.s32 1, %s3
  %s6 = scalar_select 0, %s5, %s3
  $region1: #{tpu_custom_call.1} parent=0
    #allocation2 [shape = 'u8[8192]{0}', space=vmem, size = 0x2000, scoped, tag = 'input window, operand 0, single buffered']
    #allocation3 [shape = 's32[1]{0}', space=sflag, size = 0x4, scoped, tag = 'scoped memory for tpu_custom_call.1']
    #allocation4 [shape = 's32[1]{0}', space=sflag, size = 0x4, scoped, tag = 'scoped memory for tpu_custom_call.1']
    #allocation5 [shape = 'u8[8192]{0}', space=vmem, size = 0x2000, scoped, tag = 'output window, operand 0, single buffered']
    %7 = vsyncpa [#allocation3], 0
    %8 = vsyncpa [#allocation4], 0
    // Predicated region
    $region2: #{tpu_custom_call.1} parent=1 // pred_check
      _
    $region3: #{tpu_custom_call.1} parent=1 // pred_check_branch
      %10 = sbr.rel (0) target = $region5
    $region4: #{tpu_custom_call.1} parent=1 // pred_region
      %s12 = ssub.s32 256, 256
      %13 = vsyncadd [#allocation3], %s12
      %s14 = sshll.u32 [#allocation2], 4
      %s15 = int_to_ptr.vmem [resolvable:$true] %s14
      %20 = dma.hbm_to_vmem [thread:$0]  %s0, 256, %s15, [#allocation3], 128, 128, 8
    $region5: #{tpu_custom_call.1} parent=1 // pred_fallthru
      _
    // Predicated region
    $region6: #{tpu_custom_call.1} parent=1 // pred_check
      _
    $region7: #{tpu_custom_call.1} parent=1 // pred_check_branch
      %22 = sbr.rel (0) target = $region9
    $region8: #{tpu_custom_call.1} parent=1 // pred_region
      _
    $region9: #{tpu_custom_call.1} parent=1 // pred_fallthru
      _
    // Predicated region
    $region10: #{tpu_custom_call.1} parent=1 // pred_check
      _
    $region11: #{tpu_custom_call.1} parent=1 // pred_check_branch
      %24 = sbr.rel (0) target = $region13
    $region12: #{tpu_custom_call.1} parent=1 // pred_region
      %25 = dma.done [#allocation3], 256
    $region13: #{tpu_custom_call.1} parent=1 // pred_fallthru
      _
    %v26 = vld [vmem:[#allocation2] sm:$0xff]
    %v27 = vld [vmem:[#allocation2 + $0x8] sm:$0xff]
    %v28 = vmul.f32 %v26, %v26
    %v29 = vmul.f32 %v27, %v27
    %30 = vadd.xlane.f32.xlu0 %v28
    %v31 = vpop.xlane.xlu0 %30
    %32 = vadd.xlane.f32.xlu0 %v29
    %v33 = vpop.xlane.xlu0 %32
    %v34 = vrcp.pop 128.0
    %v35 = vmul.f32 %v31, %v34
    %v36 = vmul.f32 %v33, %v34
    %v37 = vadd.f32 %v35, 1e-06
    %v38 = vadd.f32 %v36, 1e-06
    %v39 = vrsqrt.pop %v37
    %v40 = vrsqrt.pop %v38
    %v41 = vmul.f32 %v26, %v39
    %v42 = vmul.f32 %v27, %v40
    %v43 = vld [vmem:[%s1] sm:$0x1]
    %v45 = vlaneseq
    %v46 = vshrl.u32 %v45, 7
    %v47 = vsub.s32 0, %v46
    %v48 = vrot.slane %v43, %v47
    %v50 = vmul.f32 %v41, %v48
    %v51 = vmul.f32 %v42, %v48
    %52 = vst [vmem:[#allocation5] sm:$0xff] %v50
    %53 = vst [vmem:[#allocation5 + $0x8] sm:$0xff] %v51
    // Predicated region
    $region14: #{tpu_custom_call.1} parent=1 // pred_check
      _
    $region15: #{tpu_custom_call.1} parent=1 // pred_check_branch
      %55 = sbr.rel (0) target = $region17
    $region16: #{tpu_custom_call.1} parent=1 // pred_region
      %s57 = ssub.s32 256, 256
      %58 = vsyncadd [#allocation4], %s57
      %s59 = sshll.u32 [#allocation5], 4
      %s60 = int_to_ptr.vmem [resolvable:$true] %s59
      %65 = dma.vmem_to_hbm [thread:$0]  %s60, 256, %s2, [#allocation4], 128, 128, 8
    $region17: #{tpu_custom_call.1} parent=1 // pred_fallthru
      _
    // Predicated region
    $region18: #{tpu_custom_call.1} parent=1 // pred_check
      _
    $region19: #{tpu_custom_call.1} parent=1 // pred_check_branch
      %67 = sbr.rel (0) target = $region21
    $region20: #{tpu_custom_call.1} parent=1 // pred_region
      %68 = dma.done [#allocation4], 256
    $region21: #{tpu_custom_call.1} parent=1 // pred_fallthru
      _
    %69 = vsyncpa [#allocation3], 1
    %70 = vsyncpa [#allocation4], 1

</llo_original>
